<compile_context>
chip_gen: v6e
topology: v6e:2x2x1
jax: 0.10.0
libtpu: 0.0.40
codegen_flags: <defaults>
</compile_context>

<pallas_src>
import functools

import jax
import jax.numpy as jnp
from jax.experimental import pallas as pl
from jax.experimental.pallas import tpu as pltpu


def _round_up(x: int, m: int) -> int:
    return (x + m - 1) // m * m


def _patch_embed_kernel(x_ref, w_ref, b_ref, o_ref):
    # (TM, K) bf16 @ (K, N) bf16 -> f32 accumulate on the MXU, bias add in f32.
    acc = jnp.dot(x_ref[...], w_ref[...], preferred_element_type=jnp.float32)
    o_ref[...] = (acc + b_ref[...]).astype(o_ref.dtype)


def _pick_tm(block_m: int, M: int, K_pad: int, N_pad: int, vmem_budget: int) -> int:
    """Largest multiple-of-8 row tile <= block_m whose working set fits VMEM."""
    tm = min(block_m, _round_up(M, 8))
    tm = max(8, _round_up(tm, 8))

    def usage(t):
        resident = K_pad * N_pad * 2 + N_pad * 4          # weight (bf16) + bias (f32)
        streamed = 2 * t * K_pad * 2 + 2 * t * N_pad * 4  # double-buffered in/out
        return resident + streamed

    while tm > 8 and usage(tm) > vmem_budget:
        tm = max(8, _round_up(tm // 2, 8))
    return tm


@functools.partial(jax.jit, static_argnames=("patch_size", "block_m"))
def patch_embed(x, weight, bias, *, patch_size, block_m=512):
    """x: (B, C, H, W), weight: (embed_dim, C, p, p), bias: (embed_dim,).

    Returns (B, n_patches, embed_dim) in x.dtype, matching PatchEmbed.forward.
    """
    B, C, H, W = x.shape
    p = patch_size
    embed_dim = weight.shape[0]
    gh, gw = H // p, W // p
    n_patches = gh * gw

    # Patch extraction (channel-major flatten, matching Conv2d OIHW weights).
    # Eligible for fusion into the pallas_call input (allow_input_fusion below).
    patches = x.reshape(B, C, gh, p, gw, p).transpose(0, 2, 4, 1, 3, 5)
    patches = patches.reshape(B * n_patches, C * p * p)

    # Conv2d weight (embed_dim, C, p, p) -> (C*p*p, embed_dim); bias -> (1, N) f32.
    w_mat = weight.reshape(embed_dim, C * p * p).T
    b_mat = bias.reshape(1, embed_dim).astype(jnp.float32)

    M, K = patches.shape
    N = embed_dim

    # Lane-dense padding (K, N -> multiples of 128) and M tiling.
    K_pad = _round_up(K, 128)
    N_pad = _round_up(N, 128)

    vmem_limit = 48 << 20
    TM = _pick_tm(block_m, M, K_pad, N_pad, vmem_budget=(vmem_limit * 3) // 4)
    M_pad = _round_up(M, TM)

    # bf16 operands, zero-padded (zeros do not change the matmul result).
    patches_b = patches.astype(jnp.bfloat16)
    w_b = w_mat.astype(jnp.bfloat16)
    if K_pad != K:
        patches_b = jnp.pad(patches_b, ((0, 0), (0, K_pad - K)))
        w_b = jnp.pad(w_b, ((0, K_pad - K), (0, 0)))
    if M_pad != M:
        patches_b = jnp.pad(patches_b, ((0, M_pad - M), (0, 0)))
    if N_pad != N:
        w_b = jnp.pad(w_b, ((0, 0), (0, N_pad - N)))
        b_mat = jnp.pad(b_mat, ((0, 0), (0, N_pad - N)))

    grid = (M_pad // TM,)

    out = pl.pallas_call(
        _patch_embed_kernel,
        out_shape=jax.ShapeDtypeStruct((M_pad, N_pad), x.dtype),
        grid=grid,
        in_specs=[
            # Streaming operand: one TM-row tile of patches per grid step.
            pl.BlockSpec((TM, K_pad), lambda i: (i, 0)),
            # Weight / bias: constant block index -> VMEM-resident, no re-DMA.
            pl.BlockSpec((K_pad, N_pad), lambda i: (0, 0)),
            pl.BlockSpec((1, N_pad), lambda i: (0, 0)),
        ],
        out_specs=pl.BlockSpec((TM, N_pad), lambda i: (i, 0)),
        compiler_params=pltpu.CompilerParams(
            dimension_semantics=("parallel",),        # megacore sharding on v7x
            vmem_limit_bytes=vmem_limit,              # headroom vs v7x 64 MiB VMEM
            allow_input_fusion=[True, False, False],  # fuse patchification into input
        ),
        cost_estimate=pl.CostEstimate(
            flops=2 * M_pad * K_pad * N_pad,
            transcendentals=0,
            bytes_accessed=(M_pad * K_pad * 2 + K_pad * N_pad * 2
                            + N_pad * 4 + M_pad * N_pad * 4),
        ),
    )(patches_b, w_b, b_mat)

    # Drop padding, reshape to (B, n_patches, embed_dim).
    return out[:M, :N].reshape(B, n_patches, N)


if __name__ == "__main__":
    # Small shapes consistent with PatchEmbed(img_size=16, patch_size=4,
    # in_chans=4, embed_dim=32):  n_patches = (16//4)**2 = 16.
    B, C, H, W = 2, 4, 16, 16
    patch_size = 4
    embed_dim = 32

    key = jax.random.PRNGKey(0)
    kx, kw, kb = jax.random.split(key, 3)

    x = jax.random.normal(kx, (B, C, H, W), dtype=jnp.float32)
    weight = jax.random.normal(kw, (embed_dim, C, patch_size, patch_size),
                               dtype=jnp.float32) * 0.02
    bias = jax.random.normal(kb, (embed_dim,), dtype=jnp.float32) * 0.02

    out = patch_embed(x, weight, bias, patch_size=patch_size)
    jax.block_until_ready(out)
    assert out.shape == (B, (H // patch_size) ** 2, embed_dim)

    # Reference 1: full-f32 conv path (same math as torch Conv2d) -- loose
    # tolerance since the kernel runs bf16 inputs with f32 accumulation.
    ref = jax.lax.conv_general_dilated(
        x, weight, window_strides=(patch_size, patch_size), padding="VALID",
        dimension_numbers=("NCHW", "OIHW", "NCHW"),
    ) + bias.reshape(1, embed_dim, 1, 1)
    ref = ref.reshape(B, embed_dim, -1).transpose(0, 2, 1)
    assert jnp.allclose(out, ref, atol=2e-2, rtol=2e-2)

    # Reference 2: same bf16-rounded operands, f32 accumulate -- tight check.
    gh = H // patch_size
    patches_ref = (x.reshape(B, C, gh, patch_size, gh, patch_size)
                     .transpose(0, 2, 4, 1, 3, 5)
                     .reshape(B * gh * gh, C * patch_size * patch_size))
    w_ref = weight.reshape(embed_dim, -1).T
    ref2 = (patches_ref.astype(jnp.bfloat16).astype(jnp.float32)
            @ w_ref.astype(jnp.bfloat16).astype(jnp.float32)) + bias
    ref2 = ref2.reshape(B, gh * gh, embed_dim)
    assert jnp.allclose(out, ref2, atol=1e-3, rtol=1e-3)

    print("KERNEL_OK")
</pallas_src>

<mosaic_0001>
module attributes {stable_mosaic.version = 11 : i64} {
  func.func @_patch_embed_kernel(%arg0: i32, %arg1: memref<32x128xbf16, #tpu.memory_space<vmem>>, %arg2: memref<128x128xbf16, #tpu.memory_space<vmem>>, %arg3: memref<1x128xf32, #tpu.memory_space<vmem>>, %arg4: memref<32x128xf32, #tpu.memory_space<vmem>>) attributes {dimension_semantics = [#tpu.dimension_semantics<parallel>], iteration_bounds = array<i64: 1>, scalar_prefetch = 0 : i64, scratch_operands = 0 : i64, tpu.core_type = #tpu.core_type<tc>, window_params = [{transform_indices = @transform_0, window_bounds = array<i64: 32, 128>}, {pipeline_mode = #tpu.pipeline_mode<synchronous>, transform_indices = @transform_1, window_bounds = array<i64: 128, 128>}, {pipeline_mode = #tpu.pipeline_mode<synchronous>, transform_indices = @transform_2, window_bounds = array<i64: 1, 128>}, {transform_indices = @transform_3, window_bounds = array<i64: 32, 128>}]} {
    %c0 = arith.constant 0 : index
    %c0_0 = arith.constant 0 : index
    %0 = vector.load %arg1[%c0, %c0_0] : memref<32x128xbf16, #tpu.memory_space<vmem>>, vector<32x128xbf16>
    %c0_1 = arith.constant 0 : index
    %c0_2 = arith.constant 0 : index
    %1 = vector.load %arg2[%c0_1, %c0_2] : memref<128x128xbf16, #tpu.memory_space<vmem>>, vector<128x128xbf16>
    %cst = arith.constant dense<0.000000e+00> : vector<32x128xf32>
    %2 = tpu.matmul %0, %1, %cst {dimension_numbers = #tpu.dot_dimension_numbers<[1], [0], [0], [1], [0, 0, 1, 1], [], []>} : vector<32x128xbf16>, vector<128x128xbf16>, vector<32x128xf32> -> vector<32x128xf32>
    %c0_3 = arith.constant 0 : index
    %c0_4 = arith.constant 0 : index
    %3 = vector.load %arg3[%c0_3, %c0_4] : memref<1x128xf32, #tpu.memory_space<vmem>>, vector<1x128xf32>
    %4 = vector.broadcast %3 : vector<1x128xf32> to vector<32x128xf32>
    %5 = arith.addf %2, %4 : vector<32x128xf32>
    %c0_5 = arith.constant 0 : index
    %c0_6 = arith.constant 0 : index
    %6 = vector.load %arg4[%c0_5, %c0_6] : memref<32x128xf32, #tpu.memory_space<vmem>>, vector<32x128xf32>
    tpu.vector_store %arg4[%c0_5, %c0_6], %5 {strides = array<i32>} : memref<32x128xf32, #tpu.memory_space<vmem>>, vector<32x128xf32>,
    return
  }
  func.func @transform_0(%arg0: i32) -> (i32, i32) {
    %c0_i32 = arith.constant 0 : i32
    %c0_i32_0 = arith.constant 0 : i32
    return %arg0, %c0_i32 : i32, i32
  }
  func.func @transform_1(%arg0: i32) -> (i32, i32) {
    %c0_i32 = arith.constant 0 : i32
    %c0_i32_0 = arith.constant 0 : i32
    %c0_i32_1 = arith.constant 0 : i32
    return %c0_i32, %c0_i32_0 : i32, i32
  }
  func.func @transform_2(%arg0: i32) -> (i32, i32) {
    %c0_i32 = arith.constant 0 : i32
    %c0_i32_0 = arith.constant 0 : i32
    %c0_i32_1 = arith.constant 0 : i32
    return %c0_i32, %c0_i32_0 : i32, i32
  }
  func.func @transform_3(%arg0: i32) -> (i32, i32) {
    %c0_i32 = arith.constant 0 : i32
    %c0_i32_0 = arith.constant 0 : i32
    return %arg0, %c0_i32 : i32, i32
  }
}

</mosaic_0001>

<llo_original>
// kernel: patch_embed.2
$region0: #{patch_embed.2}
  #allocation0 [shape = 'u32[]', space=smem, size = 0x4, offset = 0x4, fixed_abs, tag = 'smem constant byte address 0x4 - core index']
  #allocation1 [shape = 'u32[144,128]{1,0:T(1,128)}', space=vmem, size = 0x12000, scoped, tag = 'internal scratch']
  #allocation2 [shape = 'u32[2048]{0}', space=vmem, size = 0x2000, scoped, tag = 'scoped memory for patch_embed.2']
  #allocation3 [shape = 'u32[2048]{0}', space=vmem, size = 0x2000, scoped, tag = 'scoped memory for patch_embed.2']
  #allocation4 [shape = 'u32[2048]{0}', space=vmem, size = 0x2000, scoped, tag = 'scoped memory for patch_embed.2']
  #allocation5 [shape = 'u32[2048]{0}', space=vmem, size = 0x2000, scoped, tag = 'scoped memory for patch_embed.2']
  #allocation6 [shape = 'u32[2048]{0}', space=vmem, size = 0x2000, scoped, tag = 'scoped memory for patch_embed.2']
  %s0 = inlined_call_operand.vmem [shape: bf16[128,128], index: 0, kind: input, shape index: {}]
  %s1 = inlined_call_operand.vmem [shape: f32[1,128], index: 1, kind: input, shape index: {}]
  %s2 = inlined_call_operand.vmem [shape: bf16[32,64], index: 2, kind: input, shape index: {}]
  %s3 = inlined_call_operand.<no memory space> [shape: bf16[], index: 3, kind: input, shape index: {}]
  %s4 = inlined_call_operand.hbm [shape: f32[32,128], index: 4, kind: output, shape index: {}]
  %s5 = sld [smem:[#allocation0]]
  $region22: #{patch_embed.2} parent=0
    _
  %s7 = ssub.s32 1, %s5
  %s8 = scalar_select 0, %s7, %s5
  %v9 = vstv %s3
  %v10 = vunpack.i.l.bf16 %v9
  %v12 = vunpack.i.h.bf16 %v9
  $region1: #{patch_embed.2} parent=0
    #allocation7 [shape = 'u8[16384]{0}', space=vmem, size = 0x4000, scoped, tag = 'output window, operand 0, single buffered']
    #allocation8 [shape = 's32[1]{0}', space=sflag, size = 0x4, scoped, tag = 'scoped memory for patch_embed.2']
    #allocation9 [shape = 'u8[8192]{0}', space=vmem, size = 0x2000, dematerialized = true, scoped, tag = 'FusionAdapter Buffer %fusion.1 = bf16[32,128]{1,0:T(8,128)(2,1)} fusion(%param_2.1, %param_3), kind=kLoop, calls=%fused_computation.2.clone, metadata={op_name="jit(patch_embed)/jit(_pad)/pad" stack_frame_id=13}']
    %14 = vsyncpa [#allocation8], 0
    // Predicated region
    $region2: #{patch_embed.2} parent=1 // pred_check
      _
    $region3: #{patch_embed.2} parent=1 // pred_check_branch
      %16 = sbr.rel (0) target = $region5
    $region4: #{patch_embed.2} parent=1 // pred_region
      _
    $region5: #{patch_embed.2} parent=1 // pred_fallthru
      _
    // Predicated region
    $region6: #{patch_embed.2} parent=1 // pred_check
      _
    $region7: #{patch_embed.2} parent=1 // pred_check_branch
      %18 = sbr.rel (0) target = $region9
    $region8: #{patch_embed.2} parent=1 // pred_region
      _
    $region9: #{patch_embed.2} parent=1 // pred_fallthru
      _
    // Predicated region
    $region10: #{patch_embed.2} parent=1 // pred_check
      _
    $region11: #{patch_embed.2} parent=1 // pred_check_branch
      %20 = sbr.rel (0) target = $region13
    $region12: #{patch_embed.2} parent=1 // pred_region
      _
    $region13: #{patch_embed.2} parent=1 // pred_fallthru
      _
    %s22 = sor.u32 255, 127
    %s23 = sand.u32 %s22, 85
    %s24 = sshrl.u32 %s23, 1
    %s25 = sor.u32 %s23, %s24
    %s26 = sand.u32 51, %s25
    %s27 = sshrl.u32 %s26, 2
    %s28 = sor.u32 %s26, %s27
    %s29 = sand.u32 15, %s28
    %v30 = vld [vmem:[%s2] sm:%s29]
    %v31 = vunpack.c.l.bf16 %v30
    %v32 = vunpack.c.h.bf16 %v30
    %v33 = vlaneseq
    %v34 = vand.u32 %v33, 127
    %vm36 = vcmp.lt.s32.totalorder %v34, 64
    %v37 = vsel %vm36, %v31, %v10
    %v38 = vpack.c.bf16 0.0, %v37
    %s40 = ssub.s32 16, 1
    %41 = vst [vmem:[#allocation9] sm:%s40] %v38
    %s42 = scalar_lea.vmem %s2, 4
    %s44 = sor.u32 255, 127
    %s45 = sand.u32 %s44, 85
    %s46 = sshrl.u32 %s45, 1
    %s47 = sor.u32 %s45, %s46
    %s48 = sand.u32 51, %s47
    %s49 = sshrl.u32 %s48, 2
    %s50 = sor.u32 %s48, %s49
    %s51 = sand.u32 15, %s50
    %v52 = vld [vmem:[%s42] sm:%s51]
    %v53 = vunpack.c.l.bf16 %v52
    %v54 = vunpack.c.h.bf16 %v52
    %v55 = vlaneseq
    %v56 = vand.u32 %v55, 127
    %vm58 = vcmp.lt.s32.totalorder %v56, 64
    %v59 = vsel %vm58, %v53, %v10
    %s60 = scalar_lea.vmem [#allocation9], 4
    %v61 = vpack.c.bf16 0.0, %v59
    %s63 = ssub.s32 16, 1
    %64 = vst [vmem:[%s60] sm:%s63] %v61
    %s65 = scalar_lea.vmem %s2, 8
    %s67 = sor.u32 255, 127
    %s68 = sand.u32 %s67, 85
    %s69 = sshrl.u32 %s68, 1
    %s70 = sor.u32 %s68, %s69
    %s71 = sand.u32 51, %s70
    %s72 = sshrl.u32 %s71, 2
    %s73 = sor.u32 %s71, %s72
    %s74 = sand.u32 15, %s73
    %v75 = vld [vmem:[%s65] sm:%s74]
    %v76 = vunpack.c.l.bf16 %v75
    %v77 = vunpack.c.h.bf16 %v75
    %v78 = vlaneseq
    %v79 = vand.u32 %v78, 127
    %vm81 = vcmp.lt.s32.totalorder %v79, 64
    %v82 = vsel %vm81, %v76, %v10
    %s83 = scalar_lea.vmem [#allocation9], 8
    %v84 = vpack.c.bf16 0.0, %v82
    %s86 = ssub.s32 16, 1
    %87 = vst [vmem:[%s83] sm:%s86] %v84
    %s88 = scalar_lea.vmem %s2, 12
    %s90 = sor.u32 255, 127
    %s91 = sand.u32 %s90, 85
    %s92 = sshrl.u32 %s91, 1
    %s93 = sor.u32 %s91, %s92
    %s94 = sand.u32 51, %s93
    %s95 = sshrl.u32 %s94, 2
    %s96 = sor.u32 %s94, %s95
    %s97 = sand.u32 15, %s96
    %v98 = vld [vmem:[%s88] sm:%s97]
    %v99 = vunpack.c.l.bf16 %v98
    %v100 = vunpack.c.h.bf16 %v98
    %v101 = vlaneseq
    %v102 = vand.u32 %v101, 127
    %vm104 = vcmp.lt.s32.totalorder %v102, 64
    %v105 = vsel %vm104, %v99, %v10
    %s106 = scalar_lea.vmem [#allocation9], 12
    %v107 = vpack.c.bf16 0.0, %v105
    %s109 = ssub.s32 16, 1
    %110 = vst [vmem:[%s106] sm:%s109] %v107
    %v112 = vld [vmem:[#allocation9] sm:$0xf]
    %v113 = vld [vmem:[#allocation9 + $0x4] sm:$0xf]
    %v114 = vld [vmem:[#allocation9 + $0x8] sm:$0xf]
    %v115 = vld [vmem:[#allocation9 + $0xc] sm:$0xf]
    %v116 = vld [vmem:[%s0] sm:$0xf]
    %v117 = vld [vmem:[%s0 + $0x4] sm:$0xf]
    %v118 = vld [vmem:[%s0 + $0x8] sm:$0xf]
    %v119 = vld [vmem:[%s0 + $0xc] sm:$0xf]
    %v120 = vld [vmem:[%s0 + $0x10] sm:$0xf]
    %v121 = vld [vmem:[%s0 + $0x14] sm:$0xf]
    %v122 = vld [vmem:[%s0 + $0x18] sm:$0xf]
    %v123 = vld [vmem:[%s0 + $0x1c] sm:$0xf]
    %v124 = vld [vmem:[%s0 + $0x20] sm:$0xf]
    %v125 = vld [vmem:[%s0 + $0x24] sm:$0xf]
    %v126 = vld [vmem:[%s0 + $0x28] sm:$0xf]
    %v127 = vld [vmem:[%s0 + $0x2c] sm:$0xf]
    %v128 = vld [vmem:[%s0 + $0x30] sm:$0xf]
    %v129 = vld [vmem:[%s0 + $0x34] sm:$0xf]
    %v130 = vld [vmem:[%s0 + $0x38] sm:$0xf]
    %v131 = vld [vmem:[%s0 + $0x3c] sm:$0xf]
    %v132 = vld [vmem:[%s1] sm:$0x1]
    %v134 = vlaneseq
    %v135 = vshrl.u32 %v134, 7
    %v136 = vsub.s32 0, %v135
    %v137 = vrot.slane %v132, %v136
    %v143 = vunpack.c.l.b16 %v112
    %v144 = vunpack.c.l.b16 %v113
    %v145 = vunpack.c.l.b16 %v114
    %v146 = vunpack.c.l.b16 %v115
    %v147 = vpack.c.b16 %v144, %v143
    %v148 = vpack.c.b16 %v146, %v145
    %v167 = vunpack.c.l.b16 %v116
    %v168 = vunpack.c.l.b16 %v117
    %v169 = vunpack.c.l.b16 %v118
    %v170 = vunpack.c.l.b16 %v119
    %v171 = vunpack.c.l.b16 %v120
    %v172 = vunpack.c.l.b16 %v121
    %v173 = vunpack.c.l.b16 %v122
    %v174 = vunpack.c.l.b16 %v123
    %v175 = vunpack.c.l.b16 %v124
    %v176 = vunpack.c.l.b16 %v125
    %v177 = vunpack.c.l.b16 %v126
    %v178 = vunpack.c.l.b16 %v127
    %v179 = vunpack.c.l.b16 %v128
    %v180 = vunpack.c.l.b16 %v129
    %v181 = vunpack.c.l.b16 %v130
    %v182 = vunpack.c.l.b16 %v131
    %v183 = vpack.c.b16 %v168, %v167
    %v184 = vpack.c.b16 %v170, %v169
    %v185 = vpack.c.b16 %v172, %v171
    %v186 = vpack.c.b16 %v174, %v173
    %v187 = vpack.c.b16 %v176, %v175
    %v188 = vpack.c.b16 %v178, %v177
    %v189 = vpack.c.b16 %v180, %v179
    %v190 = vpack.c.b16 %v182, %v181
    %199 = vmatprep.subr.bf16.mxu0 0
    %200 = vmatpush1.bf16.msra.mxu0 %v190
    %201 = vmatprep.subr.bf16.mxu0 0
    %202 = vmatpush1.bf16.msra.mxu0 %v189
    %203 = vmatprep.subr.bf16.mxu0 0
    %204 = vmatpush1.bf16.msra.mxu0 %v188
    %205 = vmatprep.subr.bf16.mxu0 0
    %206 = vmatpush1.bf16.msra.mxu0 %v187
    %207 = vmatprep.subr.bf16.mxu0 0
    %208 = vmatpush1.bf16.msra.mxu0 %v186
    %209 = vmatprep.subr.bf16.mxu0 0
    %210 = vmatpush1.bf16.msra.mxu0 %v185
    %211 = vmatprep.subr.bf16.mxu0 0
    %212 = vmatpush1.bf16.msra.mxu0 %v184
    %213 = vmatprep.subr.bf16.mxu0 0
    %214 = vmatpush1.bf16.msra.mxu0 %v183
    %215 = vmatprep.subr.bf16.mxu0 0
    %216 = vmatpush2.bf16.msra.mxu0 0
    %217 = vmatprep.subr.bf16.mxu0 0
    %218 = vmatpush2.bf16.msra.mxu0 0
    %219 = vmatprep.subr.bf16.mxu0 0
    %220 = vmatpush2.bf16.msra.mxu0 0
    %221 = vmatprep.subr.bf16.mxu0 0
    %222 = vmatpush2.bf16.msra.mxu0 0
    %223 = vmatprep.subr.bf16.mxu0 0
    %224 = vmatpush2.bf16.msra.mxu0 0
    %225 = vmatprep.subr.bf16.mxu0 0
    %226 = vmatpush2.bf16.msra.mxu0 0
    %227 = vmatprep.subr.bf16.mxu0 0
    %228 = vmatpush2.bf16.msra.mxu0 0
    %229 = vmatprep.subr.bf16.mxu0 0
    %230 = vmatpush2.bf16.msra.mxu0 0
    %231 = vmatprep.mubr.bf16.mxu0 0
    %232 = vmatmul.mubr.bf16.gmra.mxu0 %v147
    %v233 = vpop.f32.mrf.mxu0
    %v234 = vadd.f32 %v137, %v233
    %v235 = vpop.f32.mrf.mxu0
    %v236 = vpop.f32.mrf.mxu0
    %v237 = vadd.f32 %v137, %v236
    %v238 = vpop.f32.mrf.mxu0
    %239 = vmatprep.mubr.bf16.mxu0 0
    %240 = vmatmul.mubr.bf16.gmra.mxu0 %v148
    %v241 = vpop.f32.mrf.mxu0
    %v242 = vadd.f32 %v137, %v241
    %v243 = vpop.f32.mrf.mxu0
    %v244 = vpop.f32.mrf.mxu0
    %v245 = vadd.f32 %v137, %v244
    %v246 = vpop.f32.mrf.mxu0
    %247 = vdwg.mxu0
    %248 = vst [vmem:[#allocation7] sm:$0xff] %v234
    %249 = vst [vmem:[#allocation7 + $0x8] sm:$0xff] %v237
    %250 = vst [vmem:[#allocation7 + $0x10] sm:$0xff] %v242
    %251 = vst [vmem:[#allocation7 + $0x18] sm:$0xff] %v245
    // Predicated region
    $region14: #{patch_embed.2} parent=1 // pred_check
      _
    $region15: #{patch_embed.2} parent=1 // pred_check_branch
      %253 = sbr.rel (0) target = $region17
    $region16: #{patch_embed.2} parent=1 // pred_region
      %s255 = ssub.s32 512, 512
      %256 = vsyncadd [#allocation8], %s255
      %s257 = sshll.u32 [#allocation7], 4
      %s258 = int_to_ptr.vmem [resolvable:$true] %s257
      %263 = dma.vmem_to_hbm [thread:$0]  %s258, 512, %s4, [#allocation8], 128, 128, 8
    $region17: #{patch_embed.2} parent=1 // pred_fallthru
      _
    // Predicated region
    $region18: #{patch_embed.2} parent=1 // pred_check
      _
    $region19: #{patch_embed.2} parent=1 // pred_check_branch
      %265 = sbr.rel (0) target = $region21
    $region20: #{patch_embed.2} parent=1 // pred_region
      %266 = dma.done [#allocation8], 512
    $region21: #{patch_embed.2} parent=1 // pred_fallthru
      _
    %267 = vsyncpa [#allocation8], 1

</llo_original>
